<compile_context>
chip_gen: v5e
topology: v5e:2x2
jax: 0.10.0
libtpu: 0.0.40
codegen_flags: <defaults>
</compile_context>

<pallas_src>
import functools
import math

import jax
import jax.numpy as jnp
from jax.experimental import pallas as pl
from jax.experimental.pallas import tpu as pltpu

LN_EPS = 1e-5
_INV_SQRT2 = 1.0 / math.sqrt(2.0)


def _ffn_res_kernel(x_ref, w1_ref, b1_ref, w2_ref, b2_ref, o_ref, *,
                    gelu_in_bf16):
    # One row-tile of tokens: x_ref is (tm, dim).  Residual path kept in f32.
    x = x_ref[...].astype(jnp.float32)

    # Parameter loads hoisted; (1, D) biases stay as sublane-broadcast rows.
    b1 = b1_ref[...]                                     # (1, hidden) f32
    b2 = b2_ref[...]                                     # (1, dim)    f32

    # --- LayerNorm over last axis (biased variance, eps=1e-5), f32.
    #     The affine (gamma/beta) is folded into W1/b1 at prep time. ---
    mean = jnp.mean(x, axis=-1, keepdims=True)
    centered = x - mean
    var = jnp.mean(centered * centered, axis=-1, keepdims=True)
    y = centered * jax.lax.rsqrt(var + LN_EPS)           # (tm, dim)

    # --- Linear(dim -> hidden): bf16 MXU inputs, f32 accumulation ---
    h = jnp.dot(y.astype(jnp.bfloat16), w1_ref[...],
                preferred_element_type=jnp.float32) + b1  # (tm, hidden) f32

    # --- GELU (tanh approx -> EUP).  bf16 path halves VALU/vreg pressure and
    #     h is needed in bf16 for the second MXU matmul anyway. ---
    if gelu_in_bf16:
        h = jax.nn.gelu(h.astype(jnp.bfloat16), approximate=True)
    else:
        # f32 activation path (prefer on v5e: no bf16 VPU there).
        h = jax.nn.gelu(h, approximate=True).astype(jnp.bfloat16)

    # --- Linear(hidden -> dim): bf16 MXU inputs, f32 accumulation ---
    out = jnp.dot(h, w2_ref[...],
                  preferred_element_type=jnp.float32) + b2   # (tm, dim) f32

    # --- residual (f32) ---
    o_ref[...] = (out + x).astype(o_ref.dtype)


def _default_vmem_limit():
    """Generation-aware VMEM budget with headroom for compiler scratch."""
    try:
        cap = pltpu.get_tpu_info().vmem_capacity_bytes
    except Exception:  # interpret mode / unknown backend: conservative default
        cap = 64 * 1024 * 1024
    # ~75% of physical, capped at 100 MiB: ~48 MiB on v7x, ~96 MiB on v5e/v6e.
    return min(int(cap * 3 // 4), 100 * 1024 * 1024)


def prepare_ffn_params(gamma, beta, w1, b1, w2, b2):
    """One-time parameter prep (call ONCE, not per forward).

    * Folds the LayerNorm affine into the first Linear:
        W1' = gamma[:,None] * W1,   b1' = b1 + beta @ W1
      (mathematically identical to LN-affine followed by Linear).
    * Casts the big weight matrices to bf16 once so the per-call path does
      not re-stream/convert them from HBM.
    Weights are stored (in_features, out_features), i.e. the transpose of
    PyTorch's nn.Linear.weight.
    """
    gamma = gamma.astype(jnp.float32)
    beta = beta.astype(jnp.float32)
    w1 = w1.astype(jnp.float32)
    dim, hidden = w1.shape
    w1_folded = gamma[:, None] * w1
    b1_folded = b1.astype(jnp.float32) + beta @ w1
    return {
        "w1": w1_folded.astype(jnp.bfloat16),               # (dim, hidden)
        "b1": b1_folded.reshape(1, hidden),                  # f32
        "w2": w2.astype(jnp.bfloat16),                       # (hidden, dim)
        "b2": b2.astype(jnp.float32).reshape(1, dim),        # f32
    }


def feedforward_res(x, params, *, row_tile=256, vmem_limit_bytes=None,
                    gelu_in_bf16=True):
    """FeedForward_res forward.  x: (batch, seq, dim); params from prepare_ffn_params.

    row_tile: tune per generation (256 default; 512 on v6e for large N, keep a
    multiple of 128 on v5e).  gelu_in_bf16=False gives the f32 activation path
    (recommended on v5e).
    """
    batch, seq, dim = x.shape
    hidden = params["w1"].shape[1]
    n = batch * seq

    # Row tile: multiple of 8 (sublane), no larger than the rounded-up token
    # count, and capped so the parallel grid has >= 2 steps (v7x megacore).
    row_tile = max(8, (row_tile // 8) * 8)
    tm = min(row_tile, pl.cdiv(n, 8) * 8)
    if n >= 16:
        tm = min(tm, pl.cdiv(pl.cdiv(n, 2), 8) * 8)
    n_pad = pl.cdiv(n, tm) * tm

    x2d = x.reshape(n, dim)
    if n_pad != n:
        # Zero rows are LayerNorm-safe (var=0 -> rsqrt(eps) * 0 = 0); they are
        # sliced off below.
        x2d = jnp.pad(x2d, ((0, n_pad - n), (0, 0)))

    if vmem_limit_bytes is None:
        vmem_limit_bytes = _default_vmem_limit()

    # Parameters: whole-array, resident in VMEM for the entire kernel
    # (one-time DMA, single-buffered; not re-declared per grid step).
    param_spec = pl.BlockSpec(memory_space=pltpu.MemorySpace.VMEM)

    grid = (n_pad // tm,)
    kernel = functools.partial(_ffn_res_kernel, gelu_in_bf16=gelu_in_bf16)

    out2d = pl.pallas_call(
        kernel,
        out_shape=jax.ShapeDtypeStruct((n_pad, dim), x.dtype),
        grid_spec=pltpu.PrefetchScalarGridSpec(
            num_scalar_prefetch=0,
            grid=grid,
            in_specs=[
                pl.BlockSpec((tm, dim), lambda i: (i, 0)),   # x row tile (pipelined)
                param_spec,                                  # W1' (bf16, gamma folded)
                param_spec,                                  # b1' (f32)
                param_spec,                                  # W2  (bf16)
                param_spec,                                  # b2  (f32)
            ],
            out_specs=pl.BlockSpec((tm, dim), lambda i: (i, 0)),
        ),
        compiler_params=pltpu.CompilerParams(
            dimension_semantics=("parallel",),
            vmem_limit_bytes=vmem_limit_bytes,
        ),
    )(x2d, params["w1"], params["b1"], params["w2"], params["b2"])

    if n_pad != n:
        out2d = out2d[:n]
    return out2d.reshape(batch, seq, dim)


def _reference(x, gamma, beta, w1, b1, w2, b2):
    """Pure-JAX f32 reference of the PyTorch forward (eval mode, exact-erf GELU)."""
    xf = x.astype(jnp.float32)
    mean = jnp.mean(xf, axis=-1, keepdims=True)
    var = jnp.mean((xf - mean) ** 2, axis=-1, keepdims=True)
    y = (xf - mean) / jnp.sqrt(var + LN_EPS) * gamma + beta
    h = y @ w1 + b1
    h = 0.5 * h * (1.0 + jax.lax.erf(h * _INV_SQRT2))
    out = h @ w2 + b2
    return (out + xf).astype(x.dtype)


def _make_params(key, dim, hidden):
    kg, kb, kw1, kb1, kw2, kb2 = jax.random.split(key, 6)
    gamma = 1.0 + 0.1 * jax.random.normal(kg, (dim,), dtype=jnp.float32)
    beta = 0.1 * jax.random.normal(kb, (dim,), dtype=jnp.float32)
    w1 = jax.random.normal(kw1, (dim, hidden), dtype=jnp.float32) / math.sqrt(dim)
    b1 = 0.1 * jax.random.normal(kb1, (hidden,), dtype=jnp.float32)
    w2 = jax.random.normal(kw2, (hidden, dim), dtype=jnp.float32) / math.sqrt(hidden)
    b2 = 0.1 * jax.random.normal(kb2, (dim,), dtype=jnp.float32)
    return gamma, beta, w1, b1, w2, b2


def _check(x, raw_params, row_tile):
    prepared = prepare_ffn_params(*raw_params)   # one-time, outside per-call path
    out = feedforward_res(x, prepared, row_tile=row_tile)
    out = jax.block_until_ready(out)
    ref = _reference(x, *raw_params)
    assert out.shape == x.shape and out.dtype == x.dtype
    # bf16 MXU inputs + tanh-approx bf16 GELU vs the f32 exact-erf reference:
    # deliberate inference-grade deviation -> loosened tolerance.
    err = jnp.max(jnp.abs(out - ref))
    assert jnp.allclose(out, ref, atol=7.5e-2, rtol=5e-2), f"max abs err = {err}"


if __name__ == "__main__":
    key = jax.random.PRNGKey(0)
    k1, k2, k3, k4 = jax.random.split(key, 4)

    # Case 1: small ViT-like toy shape (batch=2, seq=8, dim=32, hidden=64).
    # N=16 -> tm=8, 2 grid steps (exercises the >=2-step megacore cap).
    batch, seq, dim, hidden = 2, 8, 32, 64
    x = jax.random.normal(k1, (batch, seq, dim), dtype=jnp.float32)
    params = _make_params(k2, dim, hidden)
    _check(x, params, row_tile=256)

    # Case 2: lane-dense dims + a token count that exercises the padded tail
    # (batch=2, seq=100 -> N=200, tm=104, padded to 208, 2 grid steps).
    batch, seq, dim, hidden = 2, 100, 128, 256
    x = jax.random.normal(k3, (batch, seq, dim), dtype=jnp.float32)
    params = _make_params(k4, dim, hidden)
    _check(x, params, row_tile=128)

    print("KERNEL_OK")
</pallas_src>

<mosaic_0001>
module attributes {stable_mosaic.version = 11 : i64} {
  func.func @_ffn_res_kernel(%arg0: i32, %arg1: memref<8x32xf32, #tpu.memory_space<vmem>>, %arg2: memref<32x64xbf16, #tpu.memory_space<vmem>>, %arg3: memref<1x64xf32, #tpu.memory_space<vmem>>, %arg4: memref<64x32xbf16, #tpu.memory_space<vmem>>, %arg5: memref<1x32xf32, #tpu.memory_space<vmem>>, %arg6: memref<8x32xf32, #tpu.memory_space<vmem>>) attributes {dimension_semantics = [#tpu.dimension_semantics<parallel>], iteration_bounds = array<i64: 2>, scalar_prefetch = 0 : i64, scratch_operands = 0 : i64, tpu.core_type = #tpu.core_type<tc>, window_params = [{transform_indices = @transform_0, window_bounds = array<i64: 8, 32>}, {pipeline_mode = #tpu.pipeline_mode<synchronous>, transform_indices = @transform_1, window_bounds = array<i64: 32, 64>}, {pipeline_mode = #tpu.pipeline_mode<synchronous>, transform_indices = @transform_2, window_bounds = array<i64: 1, 64>}, {pipeline_mode = #tpu.pipeline_mode<synchronous>, transform_indices = @transform_3, window_bounds = array<i64: 64, 32>}, {pipeline_mode = #tpu.pipeline_mode<synchronous>, transform_indices = @transform_4, window_bounds = array<i64: 1, 32>}, {transform_indices = @transform_5, window_bounds = array<i64: 8, 32>}]} {
    %c0 = arith.constant 0 : index
    %c0_0 = arith.constant 0 : index
    %0 = vector.load %arg1[%c0, %c0_0] : memref<8x32xf32, #tpu.memory_space<vmem>>, vector<8x32xf32>
    %c0_1 = arith.constant 0 : index
    %c0_2 = arith.constant 0 : index
    %1 = vector.load %arg3[%c0_1, %c0_2] : memref<1x64xf32, #tpu.memory_space<vmem>>, vector<1x64xf32>
    %c0_3 = arith.constant 0 : index
    %c0_4 = arith.constant 0 : index
    %2 = vector.load %arg5[%c0_3, %c0_4] : memref<1x32xf32, #tpu.memory_space<vmem>>, vector<1x32xf32>
    %cst = arith.constant dense<0.000000e+00> : vector<8xf32>
    %3 = vector.multi_reduction <add>, %0, %cst [1] : vector<8x32xf32> to vector<8xf32>
    %4 = vector.shape_cast %3 : vector<8xf32> to vector<8x1xf32>
    %cst_5 = arith.constant 3.200000e+01 : f32
    %5 = vector.broadcast %cst_5 : f32 to vector<8x1xf32>
    %6 = arith.divf %4, %5 : vector<8x1xf32>
    %7 = vector.broadcast %6 : vector<8x1xf32> to vector<8x32xf32>
    %8 = arith.subf %0, %7 : vector<8x32xf32>
    %9 = arith.mulf %8, %8 : vector<8x32xf32>
    %cst_6 = arith.constant dense<0.000000e+00> : vector<8xf32>
    %10 = vector.multi_reduction <add>, %9, %cst_6 [1] : vector<8x32xf32> to vector<8xf32>
    %11 = vector.shape_cast %10 : vector<8xf32> to vector<8x1xf32>
    %cst_7 = arith.constant 3.200000e+01 : f32
    %12 = vector.broadcast %cst_7 : f32 to vector<8x1xf32>
    %13 = arith.divf %11, %12 : vector<8x1xf32>
    %cst_8 = arith.constant 9.99999974E-6 : f32
    %14 = vector.broadcast %cst_8 : f32 to vector<8x1xf32>
    %15 = arith.addf %13, %14 : vector<8x1xf32>
    %16 = math.rsqrt %15 : vector<8x1xf32>
    %17 = vector.broadcast %16 : vector<8x1xf32> to vector<8x32xf32>
    %18 = arith.mulf %8, %17 : vector<8x32xf32>
    %19 = arith.truncf %18 : vector<8x32xf32> to vector<8x32xbf16>
    %c0_9 = arith.constant 0 : index
    %c0_10 = arith.constant 0 : index
    %20 = vector.load %arg2[%c0_9, %c0_10] : memref<32x64xbf16, #tpu.memory_space<vmem>>, vector<32x64xbf16>
    %cst_11 = arith.constant dense<0.000000e+00> : vector<8x64xf32>
    %21 = tpu.matmul %19, %20, %cst_11 {dimension_numbers = #tpu.dot_dimension_numbers<[1], [0], [0], [1], [0, 0, 1, 1], [], []>} : vector<8x32xbf16>, vector<32x64xbf16>, vector<8x64xf32> -> vector<8x64xf32>
    %22 = vector.broadcast %1 : vector<1x64xf32> to vector<8x64xf32>
    %23 = arith.addf %21, %22 : vector<8x64xf32>
    %24 = arith.truncf %23 : vector<8x64xf32> to vector<8x64xbf16>
    %25 = arith.mulf %24, %24 : vector<8x64xbf16>
    %26 = arith.mulf %24, %25 : vector<8x64xbf16>
    %cst_12 = arith.constant 4.467770e-02 : bf16
    %27 = vector.broadcast %cst_12 : bf16 to vector<8x64xbf16>
    %28 = arith.mulf %27, %26 : vector<8x64xbf16>
    %29 = arith.addf %24, %28 : vector<8x64xbf16>
    %cst_13 = arith.constant 7.968750e-01 : bf16
    %30 = vector.broadcast %cst_13 : bf16 to vector<8x64xbf16>
    %31 = arith.mulf %30, %29 : vector<8x64xbf16>
    %32 = math.tanh %31 : vector<8x64xbf16>
    %cst_14 = arith.constant 1.000000e+00 : bf16
    %33 = vector.broadcast %cst_14 : bf16 to vector<8x64xbf16>
    %34 = arith.addf %33, %32 : vector<8x64xbf16>
    %cst_15 = arith.constant 5.000000e-01 : bf16
    %35 = vector.broadcast %cst_15 : bf16 to vector<8x64xbf16>
    %36 = arith.mulf %35, %34 : vector<8x64xbf16>
    %37 = arith.mulf %24, %36 : vector<8x64xbf16>
    %c0_16 = arith.constant 0 : index
    %c0_17 = arith.constant 0 : index
    %38 = vector.load %arg4[%c0_16, %c0_17] : memref<64x32xbf16, #tpu.memory_space<vmem>>, vector<64x32xbf16>
    %cst_18 = arith.constant dense<0.000000e+00> : vector<8x32xf32>
    %39 = tpu.matmul %37, %38, %cst_18 {dimension_numbers = #tpu.dot_dimension_numbers<[1], [0], [0], [1], [0, 0, 1, 1], [], []>} : vector<8x64xbf16>, vector<64x32xbf16>, vector<8x32xf32> -> vector<8x32xf32>
    %40 = vector.broadcast %2 : vector<1x32xf32> to vector<8x32xf32>
    %41 = arith.addf %39, %40 : vector<8x32xf32>
    %42 = arith.addf %41, %0 : vector<8x32xf32>
    %c0_19 = arith.constant 0 : index
    %c0_20 = arith.constant 0 : index
    %43 = vector.load %arg6[%c0_19, %c0_20] : memref<8x32xf32, #tpu.memory_space<vmem>>, vector<8x32xf32>
    tpu.vector_store %arg6[%c0_19, %c0_20], %42 {strides = array<i32>} : memref<8x32xf32, #tpu.memory_space<vmem>>, vector<8x32xf32>,
    return
  }
  func.func @transform_0(%arg0: i32) -> (i32, i32) {
    %c0_i32 = arith.constant 0 : i32
    %c0_i32_0 = arith.constant 0 : i32
    return %arg0, %c0_i32 : i32, i32
  }
  func.func @transform_1(%arg0: i32) -> (i32, i32) {
    %c0_i32 = arith.constant 0 : i32
    %c0_i32_0 = arith.constant 0 : i32
    %c0_i32_1 = arith.constant 0 : i32
    return %c0_i32, %c0_i32_0 : i32, i32
  }
  func.func @transform_2(%arg0: i32) -> (i32, i32) {
    %c0_i32 = arith.constant 0 : i32
    %c0_i32_0 = arith.constant 0 : i32
    %c0_i32_1 = arith.constant 0 : i32
    return %c0_i32, %c0_i32_0 : i32, i32
  }
  func.func @transform_3(%arg0: i32) -> (i32, i32) {
    %c0_i32 = arith.constant 0 : i32
    %c0_i32_0 = arith.constant 0 : i32
    %c0_i32_1 = arith.constant 0 : i32
    return %c0_i32, %c0_i32_0 : i32, i32
  }
  func.func @transform_4(%arg0: i32) -> (i32, i32) {
    %c0_i32 = arith.constant 0 : i32
    %c0_i32_0 = arith.constant 0 : i32
    %c0_i32_1 = arith.constant 0 : i32
    return %c0_i32, %c0_i32_0 : i32, i32
  }
  func.func @transform_5(%arg0: i32) -> (i32, i32) {
    %c0_i32 = arith.constant 0 : i32
    %c0_i32_0 = arith.constant 0 : i32
    return %arg0, %c0_i32 : i32, i32
  }
}

</mosaic_0001>

<llo_original>
// kernel: tpu_custom_call.1
$region0: #{tpu_custom_call.1}
  #allocation0 [shape = 'u32[]', space=smem, size = 0x4, offset = 0x4, fixed_abs, tag = 'smem constant byte address 0x4 - core index']
  #allocation1 [shape = 'u32[72,128]{1,0:T(1,128)}', space=vmem, size = 0x9000, scoped, tag = 'internal scratch']
  %s0 = inlined_call_operand.vmem [shape: f32[16,32], index: 0, kind: input, shape index: {}]
  %s1 = inlined_call_operand.vmem [shape: bf16[32,64], index: 1, kind: input, shape index: {}]
  %s2 = inlined_call_operand.vmem [shape: f32[1,64], index: 2, kind: input, shape index: {}]
  %s3 = inlined_call_operand.vmem [shape: bf16[64,32], index: 3, kind: input, shape index: {}]
  %s4 = inlined_call_operand.vmem [shape: f32[1,32], index: 4, kind: input, shape index: {}]
  %s5 = inlined_call_operand.hbm [shape: f32[16,32], index: 5, kind: output, shape index: {}]
  %s6 = sld [smem:[#allocation0]]
  $region53: #{tpu_custom_call.1} parent=0
    _
  %s8 = ssub.s32 1, %s6
  %s9 = scalar_select 0, %s8, %s6
  $region1: #{tpu_custom_call.1} parent=0
    #allocation2 [shape = 'u8[8192]{0}', space=vmem, size = 0x2000, scoped, tag = 'output window, operand 0']
    #allocation3 [shape = 's32[2]{0}', space=sflag, size = 0x8, scoped, tag = 'scoped memory for tpu_custom_call.1']
    %10 = vsyncpa [#allocation3], 0
    %s11 = scalar_lea.sflag [#allocation3], 1
    %12 = vsyncpa %s11, 0
    loop: start=0, step=1, limit=4
    $region2: #{tpu_custom_call.1} parent=1 // loop_pre_header
      _
    $region3: #{tpu_custom_call.1} parent=1 // loop_header
      %s14 = sphi 0, %s18
      %p15 = scmp.ge.s32.totalorder %s14, 4
      %s24 = sphi 0, %s26
      %s27 = sphi 0, %s24
      %s28 = sphi 0, %s27
      %s44 = sphi 0, %s28
      %s48 = sphi 0, %s48
      %s50 = sphi 0, %s48
      %s51 = sphi 0, %s50
      %s65 = sphi 0, %s51
      %s69 = sphi 0, %s69
      %s71 = sphi 0, %s69
      %s72 = sphi 0, %s71
      %s86 = sphi 0, %s72
      %s90 = sphi 0, %s90
      %s92 = sphi 0, %s90
      %s93 = sphi 0, %s92
      %s107 = sphi 0, %s93
      %s111 = sphi 0, %s111
      %s113 = sphi 0, %s111
      %s114 = sphi 0, %s113
      %s128 = sphi 0, %s114
      %s134 = sphi 0, %s136
      %s137 = sphi 0, %s134
      %s138 = sphi 0, %s137
      %s154 = sphi 0, %s138
    $region4: #{tpu_custom_call.1} parent=1 // loop_header_branch
      %17 = sbr.rel (%p15) target = $region8
    $region5: #{tpu_custom_call.1} parent=1 // loop_body
      %s19 = ssub.s32 %s14, 1
      %s20 = ssub.s32 %s14, 2
      %s21 = sadd.s32 %s14, 1
      %s22 = ssub.s32 %s14, %s21
      %p23 = scmp.eq.s32.totalorder %s22, 0
      %s25 = sadd.s32 %s24, 1
      %s26 = scalar_select %p23, %s24, %s25
      %p29 = pneg %p23
      %p30 = scmp.eq.s32.totalorder %s14, 1
      %p31 = por %p29, %p30
      %p32 = scmp.ne.s32.totalorder %s24, %s27
      %p33 = scmp.eq.s32.totalorder %s14, 0
      %p34 = por %p32, %p33
      %p35 = scmp.ne.s32.totalorder %s24, %s27
      %p36 = scmp.eq.s32.totalorder %s19, 1
      %p37 = por %p35, %p36
      %p38 = scmp.ne.s32.totalorder %s27, %s28
      %p39 = scmp.eq.s32.totalorder %s19, 0
      %p40 = por %p38, %p39
      %p41 = scmp.ne.s32.totalorder %s27, %s28
      %p42 = scmp.eq.s32.totalorder %s20, 1
      %p43 = por %p41, %p42
      %p45 = scmp.ne.s32.totalorder %s28, %s44
      %p46 = scmp.eq.s32.totalorder %s20, 0
      %p47 = por %p45, %p46
      %s49 = sadd.s32 %s48, 1
      %p52 = scmp.eq.s32.totalorder %s14, 1
      %p53 = scmp.ne.s32.totalorder %s48, %s50
      %p54 = scmp.eq.s32.totalorder %s14, 0
      %p55 = por %p53, %p54
      %p56 = scmp.ne.s32.totalorder %s48, %s50
      %p57 = scmp.eq.s32.totalorder %s19, 1
      %p58 = por %p56, %p57
      %p59 = scmp.ne.s32.totalorder %s50, %s51
      %p60 = scmp.eq.s32.totalorder %s19, 0
      %p61 = por %p59, %p60
      %p62 = scmp.ne.s32.totalorder %s50, %s51
      %p63 = scmp.eq.s32.totalorder %s20, 1
      %p64 = por %p62, %p63
      %p66 = scmp.ne.s32.totalorder %s51, %s65
      %p67 = scmp.eq.s32.totalorder %s20, 0
      %p68 = por %p66, %p67
      %s70 = sadd.s32 %s69, 1
      %p73 = scmp.eq.s32.totalorder %s14, 1
      %p74 = scmp.ne.s32.totalorder %s69, %s71
      %p75 = scmp.eq.s32.totalorder %s14, 0
      %p76 = por %p74, %p75
      %p77 = scmp.ne.s32.totalorder %s69, %s71
      %p78 = scmp.eq.s32.totalorder %s19, 1
      %p79 = por %p77, %p78
      %p80 = scmp.ne.s32.totalorder %s71, %s72
      %p81 = scmp.eq.s32.totalorder %s19, 0
      %p82 = por %p80, %p81
      %p83 = scmp.ne.s32.totalorder %s71, %s72
      %p84 = scmp.eq.s32.totalorder %s20, 1
      %p85 = por %p83, %p84
      %p87 = scmp.ne.s32.totalorder %s72, %s86
      %p88 = scmp.eq.s32.totalorder %s20, 0
      %p89 = por %p87, %p88
      %s91 = sadd.s32 %s90, 1
      %p94 = scmp.eq.s32.totalorder %s14, 1
      %p95 = scmp.ne.s32.totalorder %s90, %s92
      %p96 = scmp.eq.s32.totalorder %s14, 0
      %p97 = por %p95, %p96
      %p98 = scmp.ne.s32.totalorder %s90, %s92
      %p99 = scmp.eq.s32.totalorder %s19, 1
      %p100 = por %p98, %p99
      %p101 = scmp.ne.s32.totalorder %s92, %s93
      %p102 = scmp.eq.s32.totalorder %s19, 0
      %p103 = por %p101, %p102
      %p104 = scmp.ne.s32.totalorder %s92, %s93
      %p105 = scmp.eq.s32.totalorder %s20, 1
      %p106 = por %p104, %p105
      %p108 = scmp.ne.s32.totalorder %s93, %s107
      %p109 = scmp.eq.s32.totalorder %s20, 0
      %p110 = por %p108, %p109
      %s112 = sadd.s32 %s111, 1
      %p115 = scmp.eq.s32.totalorder %s14, 1
      %p116 = scmp.ne.s32.totalorder %s111, %s113
      %p117 = scmp.eq.s32.totalorder %s14, 0
      %p118 = por %p116, %p117
      %p119 = scmp.ne.s32.totalorder %s111, %s113
      %p120 = scmp.eq.s32.totalorder %s19, 1
      %p121 = por %p119, %p120
      %p122 = scmp.ne.s32.totalorder %s113, %s114
      %p123 = scmp.eq.s32.totalorder %s19, 0
      %p124 = por %p122, %p123
      %p125 = scmp.ne.s32.totalorder %s113, %s114
      %p126 = scmp.eq.s32.totalorder %s20, 1
      %p127 = por %p125, %p126
      %p129 = scmp.ne.s32.totalorder %s114, %s128
      %p130 = scmp.eq.s32.totalorder %s20, 0
      %p131 = por %p129, %p130
      %s132 = ssub.s32 %s14, %s21
      %p133 = scmp.eq.s32.totalorder %s132, 0
      %s135 = sadd.s32 %s134, 1
      %s136 = scalar_select %p133, %s134, %s135
      %p139 = pneg %p133
      %p140 = scmp.eq.s32.totalorder %s14, 1
      %p141 = por %p139, %p140
      %p142 = scmp.ne.s32.totalorder %s134, %s137
      %p143 = scmp.eq.s32.totalorder %s14, 0
      %p144 = por %p142, %p143
      %p145 = scmp.ne.s32.totalorder %s134, %s137
      %p146 = scmp.eq.s32.totalorder %s19, 1
      %p147 = por %p145, %p146
      %p148 = scmp.ne.s32.totalorder %s137, %s138
      %p149 = scmp.eq.s32.totalorder %s19, 0
      %p150 = por %p148, %p149
      %p151 = scmp.ne.s32.totalorder %s137, %s138
      %p152 = scmp.eq.s32.totalorder %s20, 1
      %p153 = por %p151, %p152
      %p155 = scmp.ne.s32.totalorder %s138, %s154
      %p156 = scmp.eq.s32.totalorder %s20, 0
      %p157 = por %p155, %p156
      %p158 = scmp.le.s32.totalorder 1, %s14
      %p159 = scmp.lt.s32.totalorder %s14, 3
      %p160 = pnand %p158, %p159
      %p161 = pneg %p160
      // Predicated region
      $region9: #{tpu_custom_call.1} parent=5 // pred_check
        _
      $region10: #{tpu_custom_call.1} parent=5 // pred_check_branch
        %163 = sbr.rel (%p160) target = $region12
      $region11: #{tpu_custom_call.1} parent=5 // pred_region
        %s164 = ssub.s32 %s14, 1
        // Predicated region
        $region13: #{tpu_custom_call.1} parent=11 // pred_check
          %p165 = pneg %p61
        $region14: #{tpu_custom_call.1} parent=11 // pred_check_branch
          %167 = sbr.rel (%p165) target = $region16
        $region15: #{tpu_custom_call.1} parent=11 // pred_region
          _
        $region16: #{tpu_custom_call.1} parent=11 // pred_fallthru
          _
        // Predicated region
        $region17: #{tpu_custom_call.1} parent=11 // pred_check
          %p168 = pneg %p82
        $region18: #{tpu_custom_call.1} parent=11 // pred_check_branch
          %170 = sbr.rel (%p168) target = $region20
        $region19: #{tpu_custom_call.1} parent=11 // pred_region
          _
        $region20: #{tpu_custom_call.1} parent=11 // pred_fallthru
          _
        // Predicated region
        $region21: #{tpu_custom_call.1} parent=11 // pred_check
          %p171 = pneg %p103
        $region22: #{tpu_custom_call.1} parent=11 // pred_check_branch
          %173 = sbr.rel (%p171) target = $region24
        $region23: #{tpu_custom_call.1} parent=11 // pred_region
          _
        $region24: #{tpu_custom_call.1} parent=11 // pred_fallthru
          _
        // Predicated region
        $region25: #{tpu_custom_call.1} parent=11 // pred_check
          %p174 = pneg %p124
        $region26: #{tpu_custom_call.1} parent=11 // pred_check_branch
          %176 = sbr.rel (%p174) target = $region28
        $region27: #{tpu_custom_call.1} parent=11 // pred_region
          _
        $region28: #{tpu_custom_call.1} parent=11 // pred_fallthru
          _
      $region12: #{tpu_custom_call.1} parent=5 // pred_fallthru
        _
      %p177 = scmp.lt.s32.totalorder %s14, 2
      // Predicated region
      $region29: #{tpu_custom_call.1} parent=5 // pred_check
        %p178 = pneg %p177
      $region30: #{tpu_custom_call.1} parent=5 // pred_check_branch
        %180 = sbr.rel (%p178) target = $region32
      $region31: #{tpu_custom_call.1} parent=5 // pred_region
        // Predicated region
        $region33: #{tpu_custom_call.1} parent=31 // pred_check
          %p181 = pneg %p34
        $region34: #{tpu_custom_call.1} parent=31 // pred_check_branch
          %183 = sbr.rel (%p181) target = $region36
        $region35: #{tpu_custom_call.1} parent=31 // pred_region
          %p184 = scmp.lt.s32.totalorder %s14, 1
          %s185 = scalar_select %p184, %s14, 1
          %s186 = smul.addr %s185, 8
          %s187 = scalar_lea.vmem %s0, %s186
        $region36: #{tpu_custom_call.1} parent=31 // pred_fallthru
          _
      $region32: #{tpu_custom_call.1} parent=5 // pred_fallthru
        _
      %p188 = scmp.le.s32.totalorder 1, %s14
      %p189 = scmp.lt.s32.totalorder %s14, 3
      %p190 = pnand %p188, %p189
      %p191 = pneg %p190
      // Predicated region
      $region37: #{tpu_custom_call.1} parent=5 // pred_check
        _
      $region38: #{tpu_custom_call.1} parent=5 // pred_check_branch
        %193 = sbr.rel (%p190) target = $region40
      $region39: #{tpu_custom_call.1} parent=5 // pred_region
        %s194 = ssub.s32 %s14, 1
        %p195 = scmp.lt.s32.totalorder %s19, 1
        %s196 = scalar_select %p195, %s19, 1
        %s197 = smul.addr %s196, 8
        %s198 = scalar_lea.vmem %s0, %s197
        %p199 = pneg %p40
        %p200 = pneg %p37
        %p201 = pneg %p61
        %p202 = pneg %p58
        %p203 = pneg %p82
        %p204 = pneg %p79
        %p205 = pneg %p103
        %p206 = pneg %p100
        %p207 = pneg %p124
        %p208 = pneg %p121
        %p209 = pneg %p150
        %p210 = pneg %p147
        %s211 = sand.u32 %s137, 1
        %s212 = scalar_lea.sflag [#allocation3], %s211
        %s213 = sand.u32 %s137, 1
        %s214 = smul.addr %s213, 8
        %s215 = scalar_lea.vmem [#allocation2], %s214
        %p216 = scmp.lt.s32.totalorder %s19, 1
        %s217 = scalar_select %p216, %s19, 1
        %s218 = smul.addr %s217, 8
        %s219 = scalar_lea.vmem %s0, %s218
        %v221 = vld [vmem:[%s219] sm:$0xff]
        %v222 = vld [vmem:[%s2] sm:$0x1]
        %v223 = vld [vmem:[%s4] sm:$0x1]
        %vm224 = vcmask 261120
        %v225 = vsel %vm224, %v221, 0.0
        %226 = vadd.xlane.f32.xlu0 %v225
        %v227 = vpop.xlane.xlu0 %226
        %v228 = vrcp.pop 32.0
        %v229 = vmul.f32 32.0, %v228
        %v230 = vsub.f32 1.0, %v229
        %v231 = vmul.f32 %v228, %v230
        %v232 = vadd.f32 %v228, %v231
        %vm233 = vweird.f32 %v228
        %v234 = vsel %vm233, %v228, %v232
        %v235 = vmul.f32 %v227, %v234
        %v236 = vsub.f32 %v221, %v235
        %v237 = vmul.f32 %v236, %v236
        %v238 = vsel %vm224, %v237, 0.0
        %239 = vadd.xlane.f32.xlu0 %v238
        %v240 = vpop.xlane.xlu0 %239
        %v241 = vmul.f32 %v240, %v234
        %v242 = vadd.f32 %v241, 1e-05
        %v243 = vrsqrt.pop %v242
        %v244 = vmul.f32 %v243, %v242
        %v245 = vmul.f32 %v244, %v243
        %v246 = vmul.f32 0.5, %v245
        %v247 = vsub.f32 1.5, %v246
        %v248 = vmul.f32 %v243, %v247
        %vm249 = vweird.f32 %v242
        %vm250 = vweird.f32 %v243
        %vm251 = vmor %vm249, %vm250
        %v252 = vsel %vm251, %v243, %v248
        %v253 = vmul.f32 %v236, %v252
        %v254 = vpack.c.bf16 %v253, %v253
        %v255 = vld [vmem:[%s1] sm:$0xf]
        %v256 = vld [vmem:[%s1 + $0x4] sm:$0xf]
        %v257 = vld [vmem:[%s1 + $0x8] sm:$0xf]
        %v258 = vld [vmem:[%s1 + $0xc] sm:$0xf]
        %v260 = vperm.slane %v222, 0
        %v266 = vunpack.c.l.b16 %v255
        %v267 = vunpack.c.l.b16 %v256
        %v268 = vunpack.c.l.b16 %v257
        %v269 = vunpack.c.l.b16 %v258
        %v270 = vpack.c.b16 %v267, %v266
        %v271 = vpack.c.b16 %v269, %v268
        %v275 = vsel %vm224, %v254, 0
        %277 = vmatpush.bf16.msra.mxu0 0
        %278 = vmatpush.bf16.msra.mxu0 0
        %279 = vmatpush.bf16.msra.mxu0 0
        %280 = vmatpush.bf16.msra.mxu0 0
        %281 = vmatpush.bf16.msra.mxu0 0
        %282 = vmatpush.bf16.msra.mxu0 0
        %283 = vmatpush.bf16.msra.mxu0 %v271
        %284 = vmatpush.bf16.msra.mxu0 %v270
        %285 = vmatmul.bf16.gmra.mxu0 %v275
        %v286 = vpop.f32.mrf.mxu0
        %v287 = vadd.f32 %v260, %v286
        %v288 = vpop.f32.mrf.mxu0
        %289 = vdwg.mxu0
        %v290 = vpack.c.bf16 %v287, %v287
        %v291 = vunpack.c.l.bf16 %v290
        %v292 = vmul.f32 %v291, %v291
        %v293 = vpack.c.bf16 %v292, %v292
        %v294 = vunpack.c.l.bf16 %v293
        %v295 = vmul.f32 %v291, %v294
        %v296 = vpack.c.bf16 %v295, %v295
        %v297 = vunpack.c.l.bf16 %v296
        %v298 = vmul.f32 %v297, 0.044677734
        %v299 = vpack.c.bf16 %v298, %v298
        %v300 = vunpack.c.l.bf16 %v299
        %v301 = vadd.f32 %v291, %v300
        %v302 = vpack.c.bf16 %v301, %v301
        %v303 = vunpack.c.l.bf16 %v302
        %v304 = vmul.f32 %v303, 0.796875
        %v305 = vpack.c.bf16 %v304, %v304
        %v306 = vunpack.c.l.bf16 %v305
        %v307 = vtanh.pop %v306
        %v308 = vpack.c.bf16 %v307, %v307
        %v309 = vunpack.c.l.bf16 %v308
        %v310 = vadd.f32 %v309, 1.0
        %v311 = vpack.c.bf16 %v310, %v310
        %v312 = vunpack.c.l.bf16 %v311
        %v313 = vmul.f32 %v312, 0.5
        %v314 = vpack.c.bf16 %v313, %v313
        %v315 = vunpack.c.l.bf16 %v314
        %v316 = vmul.f32 %v291, %v315
        %v317 = vpack.c.bf16 %v316, %v316
        %v318 = vld [vmem:[%s3] sm:$0xf]
        %v319 = vld [vmem:[%s3 + $0x4] sm:$0xf]
        %v320 = vld [vmem:[%s3 + $0x8] sm:$0xf]
        %v321 = vld [vmem:[%s3 + $0xc] sm:$0xf]
        %v322 = vld [vmem:[%s3 + $0x10] sm:$0xf]
        %v323 = vld [vmem:[%s3 + $0x14] sm:$0xf]
        %v324 = vld [vmem:[%s3 + $0x18] sm:$0xf]
        %v325 = vld [vmem:[%s3 + $0x1c] sm:$0xf]
        %v327 = vperm.slane %v223, 0
        %v337 = vunpack.c.l.b16 %v318
        %v338 = vunpack.c.l.b16 %v319
        %v339 = vunpack.c.l.b16 %v320
        %v340 = vunpack.c.l.b16 %v321
        %v341 = vunpack.c.l.b16 %v322
        %v342 = vunpack.c.l.b16 %v323
        %v343 = vunpack.c.l.b16 %v324
        %v344 = vunpack.c.l.b16 %v325
        %v345 = vpack.c.b16 %v338, %v337
        %v346 = vpack.c.b16 %v340, %v339
        %v347 = vpack.c.b16 %v342, %v341
        %v348 = vpack.c.b16 %v344, %v343
        %vm353 = vcmask 523264
        %v355 = vsel %vm353, %v317, 0
        %357 = vmatpush.bf16.msra.mxu0 0
        %358 = vmatpush.bf16.msra.mxu0 0
        %359 = vmatpush.bf16.msra.mxu0 0
        %360 = vmatpush.bf16.msra.mxu0 0
        %361 = vmatpush.bf16.msra.mxu0 %v348
        %362 = vmatpush.bf16.msra.mxu0 %v347
        %363 = vmatpush.bf16.msra.mxu0 %v346
        %364 = vmatpush.bf16.msra.mxu0 %v345
        %365 = vmatmul.bf16.gmra.mxu0 %v355
        %v366 = vpop.f32.mrf.mxu0
        %v367 = vadd.f32 %v327, %v366
        %v368 = vpop.f32.mrf.mxu0
        %369 = vdwg.mxu0
        %v370 = vadd.f32 %v367, %v221
        %371 = vst.msk [vmem:[%s215] sm:$0xff] %vm224, %v370
        %s372 = sand.u32 %s137, 1
        %s373 = scalar_lea.sflag [#allocation3], %s372
        %s374 = sand.u32 %s137, 1
        %s375 = smul.addr %s374, 8
        %s376 = scalar_lea.vmem [#allocation2], %s375
        // Predicated region
        $region41: #{tpu_custom_call.1} parent=39 // pred_check
          %p377 = pneg %p147
        $region42: #{tpu_custom_call.1} parent=39 // pred_check_branch
          %379 = sbr.rel (%p377) target = $region44
        $region43: #{tpu_custom_call.1} parent=39 // pred_region
          %381 = vsyncadd %s373, 0
          %s382 = smul.addr %s19, 8
          %s383 = scalar_lea.hbm %s5, %s382
          %s385 = sshll.u32 %s376, 4
          %s386 = int_to_ptr.vmem [resolvable:$true] %s385
          %s387 = sshll.u32 %s383, 4
          %s388 = int_to_ptr.hbm [resolvable:$true] %s387
          %390 = dma.vmem_to_hbm [thread:$0]  %s386, 128, %s388, %s373
        $region44: #{tpu_custom_call.1} parent=39 // pred_fallthru
          _
      $region40: #{tpu_custom_call.1} parent=5 // pred_fallthru
        _
      %p391 = scmp.le.s32.totalorder 2, %s14
      // Predicated region
      $region45: #{tpu_custom_call.1} parent=5 // pred_check
        %p392 = pneg %p391
      $region46: #{tpu_custom_call.1} parent=5 // pred_check_branch
        %394 = sbr.rel (%p392) target = $region48
      $region47: #{tpu_custom_call.1} parent=5 // pred_region
        %s395 = ssub.s32 %s14, 2
        // Predicated region
        $region49: #{tpu_custom_call.1} parent=47 // pred_check
          %p396 = pneg %p153
        $region50: #{tpu_custom_call.1} parent=47 // pred_check_branch
          %398 = sbr.rel (%p396) target = $region52
        $region51: #{tpu_custom_call.1} parent=47 // pred_region
          %s399 = sand.u32 %s138, 1
          %s400 = scalar_lea.sflag [#allocation3], %s399
          %s401 = sand.u32 %s138, 1
          %s402 = smul.addr %s401, 8
          %s403 = scalar_lea.vmem [#allocation2], %s402
          %405 = dma.done %s400, 128
        $region52: #{tpu_custom_call.1} parent=47 // pred_fallthru
          _
      $region48: #{tpu_custom_call.1} parent=5 // pred_fallthru
        _
    $region6: #{tpu_custom_call.1} parent=1 // loop_footer
      %s18 = sadd.s32 1, %s14
    $region7: #{tpu_custom_call.1} parent=1 // loop_footer_branch
      %13 = sbr.rel target = $region3
    $region8: #{tpu_custom_call.1} parent=1 // loop_exit
      _
    %406 = vsyncpa [#allocation3], 1
    %s407 = scalar_lea.sflag [#allocation3], 1
    %408 = vsyncpa %s407, 1

</llo_original>
